<compile_context>
chip_gen: v5e
topology: v5e:2x2
jax: 0.10.0
libtpu: 0.0.40
codegen_flags: <defaults>
</compile_context>

<pallas_src>
import math
import functools

import jax
import jax.numpy as jnp
from jax import lax
from jax.experimental import pallas as pl
from jax.experimental.pallas import tpu as pltpu


def _mhsa_block_kernel(q_ref, k_ref, v_ref,
                       w_qkv_ref, w_fc_ref, vecs_ref,
                       out_ref, *, num_heads, block_b):
    # Block shapes: activations (block_b, S, D); w_qkv (3, D, D) bf16 with the
    # 1/sqrt(dk) scale folded into slot 0; w_fc (D, D) bf16;
    # vecs (8, D) f32 rows = [bq*scale, bk, bv, bfc, gamma, beta, 0, 0].
    S = q_ref.shape[1]
    D = q_ref.shape[2]
    M = block_b * S
    dk = D // num_heads
    f32, bf16 = jnp.float32, jnp.bfloat16

    # (block_b, S, D) -> (M, D): leading-dim merge only, no relayout.
    xq = q_ref[...].reshape(M, D)                     # f32, kept exact for residual
    xk = k_ref[...].reshape(M, D)
    xv = v_ref[...].reshape(M, D)

    # Loop-invariant (1, D) rows, materialized exactly once.
    vecs = vecs_ref[...]
    b_q = vecs[0:1, :]
    b_k = vecs[1:2, :]
    b_v = vecs[2:3, :]
    b_fc = vecs[3:4, :]
    gamma = vecs[4:5, :]
    beta = vecs[5:6, :]

    # Fused QKV projections: three (M, D) @ (D, D) matmuls, bias added once.
    Q = jnp.dot(xq.astype(bf16), w_qkv_ref[0], preferred_element_type=f32) + b_q
    K = jnp.dot(xk.astype(bf16), w_qkv_ref[1], preferred_element_type=f32) + b_k
    V = jnp.dot(xv.astype(bf16), w_qkv_ref[2], preferred_element_type=f32) + b_v
    Q16 = Q.astype(bf16)
    K16 = K.astype(bf16)
    V16 = V.astype(bf16)

    # Per-(batch, head) attention; ctx tiles are lane-concatenated per batch
    # (intra-vreg at dk=8) and sublane-concatenated across batches so the fc
    # projection is ONE (M, D) @ (D, D) matmul.
    score_dims = (((1,), (1,)), ((), ()))             # contract last dims, no explicit .T
    ctx_rows = []
    for b in range(block_b):
        r = b * S                                     # sublane-aligned (S == 8)
        head_ctx = []
        for h in range(num_heads):
            c = h * dk                                # static lane slice within a vreg
            qh = Q16[r:r + S, c:c + dk]
            kh = K16[r:r + S, c:c + dk]
            vh = V16[r:r + S, c:c + dk]
            s = lax.dot_general(qh, kh, score_dims,
                                preferred_element_type=f32)        # (S, S) f32
            m = jnp.max(s, axis=-1, keepdims=True)
            e = jnp.exp(s - m)
            p = e * pl.reciprocal(jnp.sum(e, axis=-1, keepdims=True), approx=True)
            head_ctx.append(jnp.dot(p.astype(bf16), vh,
                                    preferred_element_type=f32))   # (S, dk)
        ctx_rows.append(jnp.concatenate(head_ctx, axis=-1))        # (S, D)
    ctx = jnp.concatenate(ctx_rows, axis=0)                        # (M, D)

    # Fused output projection + LayerNorm + residual, vectorized over all M rows.
    x = jnp.dot(ctx.astype(bf16), w_fc_ref[...], preferred_element_type=f32) + b_fc
    mean = jnp.mean(x, axis=-1, keepdims=True)
    cen = x - mean
    var = jnp.mean(cen * cen, axis=-1, keepdims=True)
    y = cen * lax.rsqrt(var + 1e-5) * gamma + beta
    out = xq + y                                                   # residual in f32
    out_ref[...] = out.reshape(block_b, S, D)                      # single store


def prepare_params(params, *, num_heads):
    """One-time weight prepack (done once at model load time):
       stacked bf16 QKV weights with 1/sqrt(dk) folded into W_Q/b_Q, full
       (D, D) bf16 fc weight, and all six (1, D) vectors packed into (8, D)."""
    D = params["wq"].shape[0]
    dk = D // num_heads
    scale = 1.0 / math.sqrt(dk)

    w_qkv = jnp.stack([params["wq"] * scale,
                       params["wk"],
                       params["wv"]], axis=0).astype(jnp.bfloat16)   # (3, D, D)
    w_fc = params["wfc"].astype(jnp.bfloat16)                        # (D, D)
    vecs = jnp.zeros((8, D), jnp.float32)
    vecs = vecs.at[0].set((params["bq"] * scale)[0])
    vecs = vecs.at[1].set(params["bk"][0])
    vecs = vecs.at[2].set(params["bv"][0])
    vecs = vecs.at[3].set(params["bfc"][0])
    vecs = vecs.at[4].set(params["gamma"][0])
    vecs = vecs.at[5].set(params["beta"][0])                         # (8, D)
    return {"w_qkv": w_qkv, "w_fc": w_fc, "vecs": vecs}


def mhsa_block(query, key, value, prepped, *, num_heads, parallel_steps=1):
    """query/key/value: (B, S, D) float32. prepped: output of prepare_params.

    parallel_steps=1 (default) runs the whole problem in one grid step — the
    right choice on single-TensorCore parts (v5e, v6e) where extra steps only
    pay per-step overhead.  parallel_steps=2 splits the batch across two
    "parallel" steps for v7x's two TensorCores; only use it if it measures
    faster (per-step compute must exceed ~600 cycles for the split to pay).
    """
    B, S, D = query.shape
    if parallel_steps > 1 and B % parallel_steps == 0:
        block_b = B // parallel_steps
    else:
        block_b = B
    grid = (B // block_b,)

    act_spec = pl.BlockSpec((block_b, S, D), lambda i: (i, 0, 0))

    def full(shp):
        return pl.BlockSpec(shp, lambda i, _n=len(shp): (0,) * _n)

    kernel = functools.partial(_mhsa_block_kernel,
                               num_heads=num_heads, block_b=block_b)

    return pl.pallas_call(
        kernel,
        out_shape=jax.ShapeDtypeStruct((B, S, D), jnp.float32),
        grid_spec=pltpu.PrefetchScalarGridSpec(
            num_scalar_prefetch=0,
            grid=grid,
            in_specs=[
                act_spec, act_spec, act_spec,          # query, key, value
                full(prepped["w_qkv"].shape),          # (3, D, D) bf16
                full(prepped["w_fc"].shape),           # (D, D)    bf16
                full(prepped["vecs"].shape),           # (8, D): bq, bk, bv, bfc, gamma, beta
            ],
            out_specs=act_spec,
        ),
        compiler_params=pltpu.CompilerParams(
            dimension_semantics=("parallel",)),
    )(query, key, value,
      prepped["w_qkv"], prepped["w_fc"], prepped["vecs"])


def init_params(key, D):
    """Deterministic synthetic weights. Weights stored as (D_in, D_out) so y = x @ W + b."""
    ks = jax.random.split(key, 8)
    s = 1.0 / math.sqrt(D)
    return {
        "wq": jax.random.uniform(ks[0], (D, D), jnp.float32, -s, s),
        "bq": jax.random.uniform(ks[1], (1, D), jnp.float32, -s, s),
        "wk": jax.random.uniform(ks[2], (D, D), jnp.float32, -s, s),
        "bk": jax.random.uniform(ks[3], (1, D), jnp.float32, -s, s),
        "wv": jax.random.uniform(ks[4], (D, D), jnp.float32, -s, s),
        "bv": jax.random.uniform(ks[5], (1, D), jnp.float32, -s, s),
        "wfc": jax.random.uniform(ks[6], (D, D), jnp.float32, -s, s),
        "bfc": jax.random.uniform(ks[7], (1, D), jnp.float32, -s, s),
        "gamma": jnp.ones((1, D), jnp.float32),
        "beta": jnp.zeros((1, D), jnp.float32),
    }


def reference(query, key, value, params, *, num_heads):
    """Pure-JAX f32 reference mirroring the PyTorch forward."""
    B, S, D = query.shape
    dk = D // num_heads
    Q = query @ params["wq"] + params["bq"]
    K = key @ params["wk"] + params["bk"]
    V = value @ params["wv"] + params["bv"]

    def split(x):  # (B, S, D) -> (B, H, S, dk)
        return x.reshape(B, S, num_heads, dk).transpose(0, 2, 1, 3)

    Qh, Kh, Vh = split(Q), split(K), split(V)
    scores = jnp.einsum("bhqd,bhkd->bhqk", Qh, Kh) / math.sqrt(dk)
    p = jax.nn.softmax(scores, axis=-1)
    ctx = jnp.einsum("bhqk,bhkd->bhqd", p, Vh)
    ctx = ctx.transpose(0, 2, 1, 3).reshape(B, S, D)
    x = ctx @ params["wfc"] + params["bfc"]
    mean = jnp.mean(x, axis=-1, keepdims=True)
    var = jnp.mean((x - mean) ** 2, axis=-1, keepdims=True)
    xn = (x - mean) / jnp.sqrt(var + 1e-5)
    return query + (xn * params["gamma"] + params["beta"])


if __name__ == "__main__":
    B, S, D, H = 2, 8, 32, 4          # embedding_dims=32, num_heads=4
    key = jax.random.PRNGKey(0)
    kq, kk, kv, kp = jax.random.split(key, 4)

    query = jax.random.normal(kq, (B, S, D), jnp.float32)
    keyx = jax.random.normal(kk, (B, S, D), jnp.float32)
    value = jax.random.normal(kv, (B, S, D), jnp.float32)
    params = init_params(kp, D)
    prepped = prepare_params(params, num_heads=H)   # one-time weight prepack

    # Default: single grid step (right choice for v5e/v6e single-TC parts;
    # pass parallel_steps=2 on v7x only if it measures faster).
    out = mhsa_block(query, keyx, value, prepped, num_heads=H)
    out = jax.block_until_ready(out)

    ref = reference(query, keyx, value, params, num_heads=H)
    assert out.shape == (B, S, D)
    # bf16 MXU operands + approx softmax reciprocal -> compare at bf16 tolerance.
    assert jnp.allclose(out, ref, rtol=2e-2, atol=5e-2), "mismatch vs reference"

    # NOTE: attn_dropout is stored by the module but never applied in forward
    # (dropout arg of scale_dot_Product_attention is None), so it is omitted.
    print("KERNEL_OK")
</pallas_src>

<mosaic_0001>
module attributes {stable_mosaic.version = 11 : i64} {
  func.func @_mhsa_block_kernel(%arg0: i32, %arg1: memref<2x8x32xf32, #tpu.memory_space<vmem>>, %arg2: memref<2x8x32xf32, #tpu.memory_space<vmem>>, %arg3: memref<2x8x32xf32, #tpu.memory_space<vmem>>, %arg4: memref<3x32x32xbf16, #tpu.memory_space<vmem>>, %arg5: memref<32x32xbf16, #tpu.memory_space<vmem>>, %arg6: memref<8x32xf32, #tpu.memory_space<vmem>>, %arg7: memref<2x8x32xf32, #tpu.memory_space<vmem>>) attributes {dimension_semantics = [#tpu.dimension_semantics<parallel>], iteration_bounds = array<i64: 1>, scalar_prefetch = 0 : i64, scratch_operands = 0 : i64, tpu.core_type = #tpu.core_type<tc>, window_params = [{transform_indices = @transform_0, window_bounds = array<i64: 2, 8, 32>}, {transform_indices = @transform_1, window_bounds = array<i64: 2, 8, 32>}, {transform_indices = @transform_2, window_bounds = array<i64: 2, 8, 32>}, {pipeline_mode = #tpu.pipeline_mode<synchronous>, transform_indices = @transform_3, window_bounds = array<i64: 3, 32, 32>}, {pipeline_mode = #tpu.pipeline_mode<synchronous>, transform_indices = @transform_4, window_bounds = array<i64: 32, 32>}, {pipeline_mode = #tpu.pipeline_mode<synchronous>, transform_indices = @transform_5, window_bounds = array<i64: 8, 32>}, {transform_indices = @transform_6, window_bounds = array<i64: 2, 8, 32>}]} {
    %c0 = arith.constant 0 : index
    %c0_0 = arith.constant 0 : index
    %c0_1 = arith.constant 0 : index
    %0 = vector.load %arg1[%c0, %c0_0, %c0_1] : memref<2x8x32xf32, #tpu.memory_space<vmem>>, vector<2x8x32xf32>
    %1 = vector.shape_cast %0 : vector<2x8x32xf32> to vector<16x32xf32>
    %c0_2 = arith.constant 0 : index
    %c0_3 = arith.constant 0 : index
    %c0_4 = arith.constant 0 : index
    %2 = vector.load %arg2[%c0_2, %c0_3, %c0_4] : memref<2x8x32xf32, #tpu.memory_space<vmem>>, vector<2x8x32xf32>
    %3 = vector.shape_cast %2 : vector<2x8x32xf32> to vector<16x32xf32>
    %c0_5 = arith.constant 0 : index
    %c0_6 = arith.constant 0 : index
    %c0_7 = arith.constant 0 : index
    %4 = vector.load %arg3[%c0_5, %c0_6, %c0_7] : memref<2x8x32xf32, #tpu.memory_space<vmem>>, vector<2x8x32xf32>
    %5 = vector.shape_cast %4 : vector<2x8x32xf32> to vector<16x32xf32>
    %c0_8 = arith.constant 0 : index
    %c0_9 = arith.constant 0 : index
    %6 = vector.load %arg6[%c0_8, %c0_9] : memref<8x32xf32, #tpu.memory_space<vmem>>, vector<8x32xf32>
    %7 = vector.extract_strided_slice %6 {offsets = [0, 0], sizes = [1, 32], strides = [1, 1]} : vector<8x32xf32> to vector<1x32xf32>
    %8 = vector.extract_strided_slice %6 {offsets = [1, 0], sizes = [1, 32], strides = [1, 1]} : vector<8x32xf32> to vector<1x32xf32>
    %9 = vector.extract_strided_slice %6 {offsets = [2, 0], sizes = [1, 32], strides = [1, 1]} : vector<8x32xf32> to vector<1x32xf32>
    %10 = vector.extract_strided_slice %6 {offsets = [3, 0], sizes = [1, 32], strides = [1, 1]} : vector<8x32xf32> to vector<1x32xf32>
    %11 = vector.extract_strided_slice %6 {offsets = [4, 0], sizes = [1, 32], strides = [1, 1]} : vector<8x32xf32> to vector<1x32xf32>
    %12 = vector.extract_strided_slice %6 {offsets = [5, 0], sizes = [1, 32], strides = [1, 1]} : vector<8x32xf32> to vector<1x32xf32>
    %13 = arith.truncf %1 : vector<16x32xf32> to vector<16x32xbf16>
    %c0_10 = arith.constant 0 : index
    %c0_11 = arith.constant 0 : index
    %c0_12 = arith.constant 0 : index
    %14 = vector.load %arg4[%c0_10, %c0_11, %c0_12] : memref<3x32x32xbf16, #tpu.memory_space<vmem>>, vector<1x32x32xbf16>
    %15 = vector.shape_cast %14 : vector<1x32x32xbf16> to vector<32x32xbf16>
    %cst = arith.constant dense<0.000000e+00> : vector<16x32xf32>
    %16 = tpu.matmul %13, %15, %cst {dimension_numbers = #tpu.dot_dimension_numbers<[1], [0], [0], [1], [0, 0, 1, 1], [], []>} : vector<16x32xbf16>, vector<32x32xbf16>, vector<16x32xf32> -> vector<16x32xf32>
    %17 = vector.broadcast %7 : vector<1x32xf32> to vector<16x32xf32>
    %18 = arith.addf %16, %17 : vector<16x32xf32>
    %19 = arith.truncf %3 : vector<16x32xf32> to vector<16x32xbf16>
    %c1 = arith.constant 1 : index
    %c0_13 = arith.constant 0 : index
    %c0_14 = arith.constant 0 : index
    %20 = vector.load %arg4[%c1, %c0_13, %c0_14] : memref<3x32x32xbf16, #tpu.memory_space<vmem>>, vector<1x32x32xbf16>
    %21 = vector.shape_cast %20 : vector<1x32x32xbf16> to vector<32x32xbf16>
    %cst_15 = arith.constant dense<0.000000e+00> : vector<16x32xf32>
    %22 = tpu.matmul %19, %21, %cst_15 {dimension_numbers = #tpu.dot_dimension_numbers<[1], [0], [0], [1], [0, 0, 1, 1], [], []>} : vector<16x32xbf16>, vector<32x32xbf16>, vector<16x32xf32> -> vector<16x32xf32>
    %23 = vector.broadcast %8 : vector<1x32xf32> to vector<16x32xf32>
    %24 = arith.addf %22, %23 : vector<16x32xf32>
    %25 = arith.truncf %5 : vector<16x32xf32> to vector<16x32xbf16>
    %c2 = arith.constant 2 : index
    %c0_16 = arith.constant 0 : index
    %c0_17 = arith.constant 0 : index
    %26 = vector.load %arg4[%c2, %c0_16, %c0_17] : memref<3x32x32xbf16, #tpu.memory_space<vmem>>, vector<1x32x32xbf16>
    %27 = vector.shape_cast %26 : vector<1x32x32xbf16> to vector<32x32xbf16>
    %cst_18 = arith.constant dense<0.000000e+00> : vector<16x32xf32>
    %28 = tpu.matmul %25, %27, %cst_18 {dimension_numbers = #tpu.dot_dimension_numbers<[1], [0], [0], [1], [0, 0, 1, 1], [], []>} : vector<16x32xbf16>, vector<32x32xbf16>, vector<16x32xf32> -> vector<16x32xf32>
    %29 = vector.broadcast %9 : vector<1x32xf32> to vector<16x32xf32>
    %30 = arith.addf %28, %29 : vector<16x32xf32>
    %31 = arith.truncf %18 : vector<16x32xf32> to vector<16x32xbf16>
    %32 = arith.truncf %24 : vector<16x32xf32> to vector<16x32xbf16>
    %33 = arith.truncf %30 : vector<16x32xf32> to vector<16x32xbf16>
    %34 = vector.extract_strided_slice %31 {offsets = [0, 0], sizes = [8, 8], strides = [1, 1]} : vector<16x32xbf16> to vector<8x8xbf16>
    %35 = vector.extract_strided_slice %32 {offsets = [0, 0], sizes = [8, 8], strides = [1, 1]} : vector<16x32xbf16> to vector<8x8xbf16>
    %36 = vector.extract_strided_slice %33 {offsets = [0, 0], sizes = [8, 8], strides = [1, 1]} : vector<16x32xbf16> to vector<8x8xbf16>
    %cst_19 = arith.constant dense<0.000000e+00> : vector<8x8xf32>
    %37 = tpu.matmul %34, %35, %cst_19 {dimension_numbers = #tpu.dot_dimension_numbers<[1], [1], [0], [0], [0, 0, 1, 0], [], []>} : vector<8x8xbf16>, vector<8x8xbf16>, vector<8x8xf32> -> vector<8x8xf32>
    %cst_20 = arith.constant dense<0xFF800000> : vector<8xf32>
    %38 = vector.multi_reduction <maximumf>, %37, %cst_20 [1] : vector<8x8xf32> to vector<8xf32>
    %39 = vector.shape_cast %38 : vector<8xf32> to vector<8x1xf32>
    %40 = vector.broadcast %39 : vector<8x1xf32> to vector<8x8xf32>
    %41 = arith.subf %37, %40 : vector<8x8xf32>
    %42 = math.exp %41 : vector<8x8xf32>
    %cst_21 = arith.constant dense<0.000000e+00> : vector<8xf32>
    %43 = vector.multi_reduction <add>, %42, %cst_21 [1] : vector<8x8xf32> to vector<8xf32>
    %44 = vector.shape_cast %43 : vector<8xf32> to vector<8x1xf32>
    %45 = tpu.reciprocal %44 {approx = true} : vector<8x1xf32> -> vector<8x1xf32>
    %46 = vector.broadcast %45 : vector<8x1xf32> to vector<8x8xf32>
    %47 = arith.mulf %42, %46 : vector<8x8xf32>
    %48 = arith.truncf %47 : vector<8x8xf32> to vector<8x8xbf16>
    %cst_22 = arith.constant dense<0.000000e+00> : vector<8x8xf32>
    %49 = tpu.matmul %48, %36, %cst_22 {dimension_numbers = #tpu.dot_dimension_numbers<[1], [0], [0], [1], [0, 0, 1, 1], [], []>} : vector<8x8xbf16>, vector<8x8xbf16>, vector<8x8xf32> -> vector<8x8xf32>
    %50 = vector.extract_strided_slice %31 {offsets = [0, 8], sizes = [8, 8], strides = [1, 1]} : vector<16x32xbf16> to vector<8x8xbf16>
    %51 = vector.extract_strided_slice %32 {offsets = [0, 8], sizes = [8, 8], strides = [1, 1]} : vector<16x32xbf16> to vector<8x8xbf16>
    %52 = vector.extract_strided_slice %33 {offsets = [0, 8], sizes = [8, 8], strides = [1, 1]} : vector<16x32xbf16> to vector<8x8xbf16>
    %cst_23 = arith.constant dense<0.000000e+00> : vector<8x8xf32>
    %53 = tpu.matmul %50, %51, %cst_23 {dimension_numbers = #tpu.dot_dimension_numbers<[1], [1], [0], [0], [0, 0, 1, 0], [], []>} : vector<8x8xbf16>, vector<8x8xbf16>, vector<8x8xf32> -> vector<8x8xf32>
    %cst_24 = arith.constant dense<0xFF800000> : vector<8xf32>
    %54 = vector.multi_reduction <maximumf>, %53, %cst_24 [1] : vector<8x8xf32> to vector<8xf32>
    %55 = vector.shape_cast %54 : vector<8xf32> to vector<8x1xf32>
    %56 = vector.broadcast %55 : vector<8x1xf32> to vector<8x8xf32>
    %57 = arith.subf %53, %56 : vector<8x8xf32>
    %58 = math.exp %57 : vector<8x8xf32>
    %cst_25 = arith.constant dense<0.000000e+00> : vector<8xf32>
    %59 = vector.multi_reduction <add>, %58, %cst_25 [1] : vector<8x8xf32> to vector<8xf32>
    %60 = vector.shape_cast %59 : vector<8xf32> to vector<8x1xf32>
    %61 = tpu.reciprocal %60 {approx = true} : vector<8x1xf32> -> vector<8x1xf32>
    %62 = vector.broadcast %61 : vector<8x1xf32> to vector<8x8xf32>
    %63 = arith.mulf %58, %62 : vector<8x8xf32>
    %64 = arith.truncf %63 : vector<8x8xf32> to vector<8x8xbf16>
    %cst_26 = arith.constant dense<0.000000e+00> : vector<8x8xf32>
    %65 = tpu.matmul %64, %52, %cst_26 {dimension_numbers = #tpu.dot_dimension_numbers<[1], [0], [0], [1], [0, 0, 1, 1], [], []>} : vector<8x8xbf16>, vector<8x8xbf16>, vector<8x8xf32> -> vector<8x8xf32>
    %66 = vector.extract_strided_slice %31 {offsets = [0, 16], sizes = [8, 8], strides = [1, 1]} : vector<16x32xbf16> to vector<8x8xbf16>
    %67 = vector.extract_strided_slice %32 {offsets = [0, 16], sizes = [8, 8], strides = [1, 1]} : vector<16x32xbf16> to vector<8x8xbf16>
    %68 = vector.extract_strided_slice %33 {offsets = [0, 16], sizes = [8, 8], strides = [1, 1]} : vector<16x32xbf16> to vector<8x8xbf16>
    %cst_27 = arith.constant dense<0.000000e+00> : vector<8x8xf32>
    %69 = tpu.matmul %66, %67, %cst_27 {dimension_numbers = #tpu.dot_dimension_numbers<[1], [1], [0], [0], [0, 0, 1, 0], [], []>} : vector<8x8xbf16>, vector<8x8xbf16>, vector<8x8xf32> -> vector<8x8xf32>
    %cst_28 = arith.constant dense<0xFF800000> : vector<8xf32>
    %70 = vector.multi_reduction <maximumf>, %69, %cst_28 [1] : vector<8x8xf32> to vector<8xf32>
    %71 = vector.shape_cast %70 : vector<8xf32> to vector<8x1xf32>
    %72 = vector.broadcast %71 : vector<8x1xf32> to vector<8x8xf32>
    %73 = arith.subf %69, %72 : vector<8x8xf32>
    %74 = math.exp %73 : vector<8x8xf32>
    %cst_29 = arith.constant dense<0.000000e+00> : vector<8xf32>
    %75 = vector.multi_reduction <add>, %74, %cst_29 [1] : vector<8x8xf32> to vector<8xf32>
    %76 = vector.shape_cast %75 : vector<8xf32> to vector<8x1xf32>
    %77 = tpu.reciprocal %76 {approx = true} : vector<8x1xf32> -> vector<8x1xf32>
    %78 = vector.broadcast %77 : vector<8x1xf32> to vector<8x8xf32>
    %79 = arith.mulf %74, %78 : vector<8x8xf32>
    %80 = arith.truncf %79 : vector<8x8xf32> to vector<8x8xbf16>
    %cst_30 = arith.constant dense<0.000000e+00> : vector<8x8xf32>
    %81 = tpu.matmul %80, %68, %cst_30 {dimension_numbers = #tpu.dot_dimension_numbers<[1], [0], [0], [1], [0, 0, 1, 1], [], []>} : vector<8x8xbf16>, vector<8x8xbf16>, vector<8x8xf32> -> vector<8x8xf32>
    %82 = vector.extract_strided_slice %31 {offsets = [0, 24], sizes = [8, 8], strides = [1, 1]} : vector<16x32xbf16> to vector<8x8xbf16>
    %83 = vector.extract_strided_slice %32 {offsets = [0, 24], sizes = [8, 8], strides = [1, 1]} : vector<16x32xbf16> to vector<8x8xbf16>
    %84 = vector.extract_strided_slice %33 {offsets = [0, 24], sizes = [8, 8], strides = [1, 1]} : vector<16x32xbf16> to vector<8x8xbf16>
    %cst_31 = arith.constant dense<0.000000e+00> : vector<8x8xf32>
    %85 = tpu.matmul %82, %83, %cst_31 {dimension_numbers = #tpu.dot_dimension_numbers<[1], [1], [0], [0], [0, 0, 1, 0], [], []>} : vector<8x8xbf16>, vector<8x8xbf16>, vector<8x8xf32> -> vector<8x8xf32>
    %cst_32 = arith.constant dense<0xFF800000> : vector<8xf32>
    %86 = vector.multi_reduction <maximumf>, %85, %cst_32 [1] : vector<8x8xf32> to vector<8xf32>
    %87 = vector.shape_cast %86 : vector<8xf32> to vector<8x1xf32>
    %88 = vector.broadcast %87 : vector<8x1xf32> to vector<8x8xf32>
    %89 = arith.subf %85, %88 : vector<8x8xf32>
    %90 = math.exp %89 : vector<8x8xf32>
    %cst_33 = arith.constant dense<0.000000e+00> : vector<8xf32>
    %91 = vector.multi_reduction <add>, %90, %cst_33 [1] : vector<8x8xf32> to vector<8xf32>
    %92 = vector.shape_cast %91 : vector<8xf32> to vector<8x1xf32>
    %93 = tpu.reciprocal %92 {approx = true} : vector<8x1xf32> -> vector<8x1xf32>
    %94 = vector.broadcast %93 : vector<8x1xf32> to vector<8x8xf32>
    %95 = arith.mulf %90, %94 : vector<8x8xf32>
    %96 = arith.truncf %95 : vector<8x8xf32> to vector<8x8xbf16>
    %cst_34 = arith.constant dense<0.000000e+00> : vector<8x8xf32>
    %97 = tpu.matmul %96, %84, %cst_34 {dimension_numbers = #tpu.dot_dimension_numbers<[1], [0], [0], [1], [0, 0, 1, 1], [], []>} : vector<8x8xbf16>, vector<8x8xbf16>, vector<8x8xf32> -> vector<8x8xf32>
    %98 = tpu.concatenate %49, %65, %81, %97 in 1 : vector<8x8xf32>, vector<8x8xf32>, vector<8x8xf32>, vector<8x8xf32> -> vector<8x32xf32>
    %99 = vector.extract_strided_slice %31 {offsets = [8, 0], sizes = [8, 8], strides = [1, 1]} : vector<16x32xbf16> to vector<8x8xbf16>
    %100 = vector.extract_strided_slice %32 {offsets = [8, 0], sizes = [8, 8], strides = [1, 1]} : vector<16x32xbf16> to vector<8x8xbf16>
    %101 = vector.extract_strided_slice %33 {offsets = [8, 0], sizes = [8, 8], strides = [1, 1]} : vector<16x32xbf16> to vector<8x8xbf16>
    %cst_35 = arith.constant dense<0.000000e+00> : vector<8x8xf32>
    %102 = tpu.matmul %99, %100, %cst_35 {dimension_numbers = #tpu.dot_dimension_numbers<[1], [1], [0], [0], [0, 0, 1, 0], [], []>} : vector<8x8xbf16>, vector<8x8xbf16>, vector<8x8xf32> -> vector<8x8xf32>
    %cst_36 = arith.constant dense<0xFF800000> : vector<8xf32>
    %103 = vector.multi_reduction <maximumf>, %102, %cst_36 [1] : vector<8x8xf32> to vector<8xf32>
    %104 = vector.shape_cast %103 : vector<8xf32> to vector<8x1xf32>
    %105 = vector.broadcast %104 : vector<8x1xf32> to vector<8x8xf32>
    %106 = arith.subf %102, %105 : vector<8x8xf32>
    %107 = math.exp %106 : vector<8x8xf32>
    %cst_37 = arith.constant dense<0.000000e+00> : vector<8xf32>
    %108 = vector.multi_reduction <add>, %107, %cst_37 [1] : vector<8x8xf32> to vector<8xf32>
    %109 = vector.shape_cast %108 : vector<8xf32> to vector<8x1xf32>
    %110 = tpu.reciprocal %109 {approx = true} : vector<8x1xf32> -> vector<8x1xf32>
    %111 = vector.broadcast %110 : vector<8x1xf32> to vector<8x8xf32>
    %112 = arith.mulf %107, %111 : vector<8x8xf32>
    %113 = arith.truncf %112 : vector<8x8xf32> to vector<8x8xbf16>
    %cst_38 = arith.constant dense<0.000000e+00> : vector<8x8xf32>
    %114 = tpu.matmul %113, %101, %cst_38 {dimension_numbers = #tpu.dot_dimension_numbers<[1], [0], [0], [1], [0, 0, 1, 1], [], []>} : vector<8x8xbf16>, vector<8x8xbf16>, vector<8x8xf32> -> vector<8x8xf32>
    %115 = vector.extract_strided_slice %31 {offsets = [8, 8], sizes = [8, 8], strides = [1, 1]} : vector<16x32xbf16> to vector<8x8xbf16>
    %116 = vector.extract_strided_slice %32 {offsets = [8, 8], sizes = [8, 8], strides = [1, 1]} : vector<16x32xbf16> to vector<8x8xbf16>
    %117 = vector.extract_strided_slice %33 {offsets = [8, 8], sizes = [8, 8], strides = [1, 1]} : vector<16x32xbf16> to vector<8x8xbf16>
    %cst_39 = arith.constant dense<0.000000e+00> : vector<8x8xf32>
    %118 = tpu.matmul %115, %116, %cst_39 {dimension_numbers = #tpu.dot_dimension_numbers<[1], [1], [0], [0], [0, 0, 1, 0], [], []>} : vector<8x8xbf16>, vector<8x8xbf16>, vector<8x8xf32> -> vector<8x8xf32>
    %cst_40 = arith.constant dense<0xFF800000> : vector<8xf32>
    %119 = vector.multi_reduction <maximumf>, %118, %cst_40 [1] : vector<8x8xf32> to vector<8xf32>
    %120 = vector.shape_cast %119 : vector<8xf32> to vector<8x1xf32>
    %121 = vector.broadcast %120 : vector<8x1xf32> to vector<8x8xf32>
    %122 = arith.subf %118, %121 : vector<8x8xf32>
    %123 = math.exp %122 : vector<8x8xf32>
    %cst_41 = arith.constant dense<0.000000e+00> : vector<8xf32>
    %124 = vector.multi_reduction <add>, %123, %cst_41 [1] : vector<8x8xf32> to vector<8xf32>
    %125 = vector.shape_cast %124 : vector<8xf32> to vector<8x1xf32>
    %126 = tpu.reciprocal %125 {approx = true} : vector<8x1xf32> -> vector<8x1xf32>
    %127 = vector.broadcast %126 : vector<8x1xf32> to vector<8x8xf32>
    %128 = arith.mulf %123, %127 : vector<8x8xf32>
    %129 = arith.truncf %128 : vector<8x8xf32> to vector<8x8xbf16>
    %cst_42 = arith.constant dense<0.000000e+00> : vector<8x8xf32>
    %130 = tpu.matmul %129, %117, %cst_42 {dimension_numbers = #tpu.dot_dimension_numbers<[1], [0], [0], [1], [0, 0, 1, 1], [], []>} : vector<8x8xbf16>, vector<8x8xbf16>, vector<8x8xf32> -> vector<8x8xf32>
    %131 = vector.extract_strided_slice %31 {offsets = [8, 16], sizes = [8, 8], strides = [1, 1]} : vector<16x32xbf16> to vector<8x8xbf16>
    %132 = vector.extract_strided_slice %32 {offsets = [8, 16], sizes = [8, 8], strides = [1, 1]} : vector<16x32xbf16> to vector<8x8xbf16>
    %133 = vector.extract_strided_slice %33 {offsets = [8, 16], sizes = [8, 8], strides = [1, 1]} : vector<16x32xbf16> to vector<8x8xbf16>
    %cst_43 = arith.constant dense<0.000000e+00> : vector<8x8xf32>
    %134 = tpu.matmul %131, %132, %cst_43 {dimension_numbers = #tpu.dot_dimension_numbers<[1], [1], [0], [0], [0, 0, 1, 0], [], []>} : vector<8x8xbf16>, vector<8x8xbf16>, vector<8x8xf32> -> vector<8x8xf32>
    %cst_44 = arith.constant dense<0xFF800000> : vector<8xf32>
    %135 = vector.multi_reduction <maximumf>, %134, %cst_44 [1] : vector<8x8xf32> to vector<8xf32>
    %136 = vector.shape_cast %135 : vector<8xf32> to vector<8x1xf32>
    %137 = vector.broadcast %136 : vector<8x1xf32> to vector<8x8xf32>
    %138 = arith.subf %134, %137 : vector<8x8xf32>
    %139 = math.exp %138 : vector<8x8xf32>
    %cst_45 = arith.constant dense<0.000000e+00> : vector<8xf32>
    %140 = vector.multi_reduction <add>, %139, %cst_45 [1] : vector<8x8xf32> to vector<8xf32>
    %141 = vector.shape_cast %140 : vector<8xf32> to vector<8x1xf32>
    %142 = tpu.reciprocal %141 {approx = true} : vector<8x1xf32> -> vector<8x1xf32>
    %143 = vector.broadcast %142 : vector<8x1xf32> to vector<8x8xf32>
    %144 = arith.mulf %139, %143 : vector<8x8xf32>
    %145 = arith.truncf %144 : vector<8x8xf32> to vector<8x8xbf16>
    %cst_46 = arith.constant dense<0.000000e+00> : vector<8x8xf32>
    %146 = tpu.matmul %145, %133, %cst_46 {dimension_numbers = #tpu.dot_dimension_numbers<[1], [0], [0], [1], [0, 0, 1, 1], [], []>} : vector<8x8xbf16>, vector<8x8xbf16>, vector<8x8xf32> -> vector<8x8xf32>
    %147 = vector.extract_strided_slice %31 {offsets = [8, 24], sizes = [8, 8], strides = [1, 1]} : vector<16x32xbf16> to vector<8x8xbf16>
    %148 = vector.extract_strided_slice %32 {offsets = [8, 24], sizes = [8, 8], strides = [1, 1]} : vector<16x32xbf16> to vector<8x8xbf16>
    %149 = vector.extract_strided_slice %33 {offsets = [8, 24], sizes = [8, 8], strides = [1, 1]} : vector<16x32xbf16> to vector<8x8xbf16>
    %cst_47 = arith.constant dense<0.000000e+00> : vector<8x8xf32>
    %150 = tpu.matmul %147, %148, %cst_47 {dimension_numbers = #tpu.dot_dimension_numbers<[1], [1], [0], [0], [0, 0, 1, 0], [], []>} : vector<8x8xbf16>, vector<8x8xbf16>, vector<8x8xf32> -> vector<8x8xf32>
    %cst_48 = arith.constant dense<0xFF800000> : vector<8xf32>
    %151 = vector.multi_reduction <maximumf>, %150, %cst_48 [1] : vector<8x8xf32> to vector<8xf32>
    %152 = vector.shape_cast %151 : vector<8xf32> to vector<8x1xf32>
    %153 = vector.broadcast %152 : vector<8x1xf32> to vector<8x8xf32>
    %154 = arith.subf %150, %153 : vector<8x8xf32>
    %155 = math.exp %154 : vector<8x8xf32>
    %cst_49 = arith.constant dense<0.000000e+00> : vector<8xf32>
    %156 = vector.multi_reduction <add>, %155, %cst_49 [1] : vector<8x8xf32> to vector<8xf32>
    %157 = vector.shape_cast %156 : vector<8xf32> to vector<8x1xf32>
    %158 = tpu.reciprocal %157 {approx = true} : vector<8x1xf32> -> vector<8x1xf32>
    %159 = vector.broadcast %158 : vector<8x1xf32> to vector<8x8xf32>
    %160 = arith.mulf %155, %159 : vector<8x8xf32>
    %161 = arith.truncf %160 : vector<8x8xf32> to vector<8x8xbf16>
    %cst_50 = arith.constant dense<0.000000e+00> : vector<8x8xf32>
    %162 = tpu.matmul %161, %149, %cst_50 {dimension_numbers = #tpu.dot_dimension_numbers<[1], [0], [0], [1], [0, 0, 1, 1], [], []>} : vector<8x8xbf16>, vector<8x8xbf16>, vector<8x8xf32> -> vector<8x8xf32>
    %163 = tpu.concatenate %114, %130, %146, %162 in 1 : vector<8x8xf32>, vector<8x8xf32>, vector<8x8xf32>, vector<8x8xf32> -> vector<8x32xf32>
    %164 = tpu.concatenate %98, %163 in 0 : vector<8x32xf32>, vector<8x32xf32> -> vector<16x32xf32>
    %165 = arith.truncf %164 : vector<16x32xf32> to vector<16x32xbf16>
    %c0_51 = arith.constant 0 : index
    %c0_52 = arith.constant 0 : index
    %166 = vector.load %arg5[%c0_51, %c0_52] : memref<32x32xbf16, #tpu.memory_space<vmem>>, vector<32x32xbf16>
    %cst_53 = arith.constant dense<0.000000e+00> : vector<16x32xf32>
    %167 = tpu.matmul %165, %166, %cst_53 {dimension_numbers = #tpu.dot_dimension_numbers<[1], [0], [0], [1], [0, 0, 1, 1], [], []>} : vector<16x32xbf16>, vector<32x32xbf16>, vector<16x32xf32> -> vector<16x32xf32>
    %168 = vector.broadcast %10 : vector<1x32xf32> to vector<16x32xf32>
    %169 = arith.addf %167, %168 : vector<16x32xf32>
    %cst_54 = arith.constant dense<0.000000e+00> : vector<16xf32>
    %170 = vector.multi_reduction <add>, %169, %cst_54 [1] : vector<16x32xf32> to vector<16xf32>
    %171 = vector.shape_cast %170 : vector<16xf32> to vector<16x1xf32>
    %cst_55 = arith.constant 3.200000e+01 : f32
    %172 = vector.broadcast %cst_55 : f32 to vector<16x1xf32>
    %173 = arith.divf %171, %172 : vector<16x1xf32>
    %174 = vector.broadcast %173 : vector<16x1xf32> to vector<16x32xf32>
    %175 = arith.subf %169, %174 : vector<16x32xf32>
    %176 = arith.mulf %175, %175 : vector<16x32xf32>
    %cst_56 = arith.constant dense<0.000000e+00> : vector<16xf32>
    %177 = vector.multi_reduction <add>, %176, %cst_56 [1] : vector<16x32xf32> to vector<16xf32>
    %178 = vector.shape_cast %177 : vector<16xf32> to vector<16x1xf32>
    %cst_57 = arith.constant 3.200000e+01 : f32
    %179 = vector.broadcast %cst_57 : f32 to vector<16x1xf32>
    %180 = arith.divf %178, %179 : vector<16x1xf32>
    %cst_58 = arith.constant 9.99999974E-6 : f32
    %181 = vector.broadcast %cst_58 : f32 to vector<16x1xf32>
    %182 = arith.addf %180, %181 : vector<16x1xf32>
    %183 = math.rsqrt %182 : vector<16x1xf32>
    %184 = vector.broadcast %183 : vector<16x1xf32> to vector<16x32xf32>
    %185 = arith.mulf %175, %184 : vector<16x32xf32>
    %186 = vector.broadcast %11 : vector<1x32xf32> to vector<16x32xf32>
    %187 = arith.mulf %185, %186 : vector<16x32xf32>
    %188 = vector.broadcast %12 : vector<1x32xf32> to vector<16x32xf32>
    %189 = arith.addf %187, %188 : vector<16x32xf32>
    %190 = arith.addf %1, %189 : vector<16x32xf32>
    %191 = vector.shape_cast %190 : vector<16x32xf32> to vector<2x8x32xf32>
    %c0_59 = arith.constant 0 : index
    %c0_60 = arith.constant 0 : index
    %c0_61 = arith.constant 0 : index
    %192 = vector.load %arg7[%c0_59, %c0_60, %c0_61] : memref<2x8x32xf32, #tpu.memory_space<vmem>>, vector<2x8x32xf32>
    tpu.vector_store %arg7[%c0_59, %c0_60, %c0_61], %191 {strides = array<i32>} : memref<2x8x32xf32, #tpu.memory_space<vmem>>, vector<2x8x32xf32>,
    return
  }
  func.func @transform_0(%arg0: i32) -> (i32, i32, i32) {
    %c0_i32 = arith.constant 0 : i32
    %c0_i32_0 = arith.constant 0 : i32
    %c0_i32_1 = arith.constant 0 : i32
    return %arg0, %c0_i32, %c0_i32_0 : i32, i32, i32
  }
  func.func @transform_1(%arg0: i32) -> (i32, i32, i32) {
    %c0_i32 = arith.constant 0 : i32
    %c0_i32_0 = arith.constant 0 : i32
    %c0_i32_1 = arith.constant 0 : i32
    return %arg0, %c0_i32, %c0_i32_0 : i32, i32, i32
  }
  func.func @transform_2(%arg0: i32) -> (i32, i32, i32) {
    %c0_i32 = arith.constant 0 : i32
    %c0_i32_0 = arith.constant 0 : i32
    %c0_i32_1 = arith.constant 0 : i32
    return %arg0, %c0_i32, %c0_i32_0 : i32, i32, i32
  }
  func.func @transform_3(%arg0: i32) -> (i32, i32, i32) {
    %c0_i32 = arith.constant 0 : i32
    %c0_i32_0 = arith.constant 0 : i32
    %c0_i32_1 = arith.constant 0 : i32
    %c0_i32_2 = arith.constant 0 : i32
    return %c0_i32, %c0_i32_0, %c0_i32_1 : i32, i32, i32
  }
  func.func @transform_4(%arg0: i32) -> (i32, i32) {
    %c0_i32 = arith.constant 0 : i32
    %c0_i32_0 = arith.constant 0 : i32
    %c0_i32_1 = arith.constant 0 : i32
    return %c0_i32, %c0_i32_0 : i32, i32
  }
  func.func @transform_5(%arg0: i32) -> (i32, i32) {
    %c0_i32 = arith.constant 0 : i32
    %c0_i32_0 = arith.constant 0 : i32
    %c0_i32_1 = arith.constant 0 : i32
    return %c0_i32, %c0_i32_0 : i32, i32
  }
  func.func @transform_6(%arg0: i32) -> (i32, i32, i32) {
    %c0_i32 = arith.constant 0 : i32
    %c0_i32_0 = arith.constant 0 : i32
    %c0_i32_1 = arith.constant 0 : i32
    return %arg0, %c0_i32, %c0_i32_0 : i32, i32, i32
  }
}

</mosaic_0001>

<llo_original>
// kernel: tpu_custom_call.1
$region0: #{tpu_custom_call.1}
  #allocation0 [shape = 'u32[]', space=smem, size = 0x4, offset = 0x4, fixed_abs, tag = 'smem constant byte address 0x4 - core index']
  #allocation1 [shape = 'u32[72,128]{1,0:T(1,128)}', space=vmem, size = 0x9000, scoped, tag = 'internal scratch']
  %s0 = inlined_call_operand.hbm [shape: f32[2,8,32], index: 0, kind: input, shape index: {}]
  %s1 = inlined_call_operand.hbm [shape: f32[2,8,32], index: 1, kind: input, shape index: {}]
  %s2 = inlined_call_operand.hbm [shape: f32[2,8,32], index: 2, kind: input, shape index: {}]
  %s3 = inlined_call_operand.hbm [shape: bf16[3,32,32], index: 3, kind: input, shape index: {}]
  %s4 = inlined_call_operand.hbm [shape: bf16[32,32], index: 4, kind: input, shape index: {}]
  %s5 = inlined_call_operand.hbm [shape: f32[8,32], index: 5, kind: input, shape index: {}]
  %s6 = inlined_call_operand.hbm [shape: f32[2,8,32], index: 6, kind: output, shape index: {}]
  %s7 = sld [smem:[#allocation0]]
  $region58: #{tpu_custom_call.1} parent=0
    _
  %s9 = ssub.s32 1, %s7
  %s10 = scalar_select 0, %s9, %s7
  $region1: #{tpu_custom_call.1} parent=0
    #allocation2 [shape = 'u8[8192]{0}', space=vmem, size = 0x2000, scoped, tag = 'input window, operand 0, single buffered']
    #allocation3 [shape = 's32[1]{0}', space=sflag, size = 0x4, scoped, tag = 'scoped memory for tpu_custom_call.1']
    #allocation4 [shape = 's32[1]{0}', space=sflag, size = 0x4, scoped, tag = 'scoped memory for tpu_custom_call.1']
    #allocation5 [shape = 'u8[8192]{0}', space=vmem, size = 0x2000, scoped, tag = 'input window, operand 1, single buffered']
    #allocation6 [shape = 's32[1]{0}', space=sflag, size = 0x4, scoped, tag = 'scoped memory for tpu_custom_call.1']
    #allocation7 [shape = 'u8[8192]{0}', space=vmem, size = 0x2000, scoped, tag = 'input window, operand 2, single buffered']
    #allocation8 [shape = 'u8[24576]{0}', space=vmem, size = 0x6000, scoped, tag = 'input window, operand 3, single buffered']
    #allocation9 [shape = 's32[1]{0}', space=sflag, size = 0x4, scoped, tag = 'scoped memory for tpu_custom_call.1']
    #allocation10 [shape = 'u8[8192]{0}', space=vmem, size = 0x2000, scoped, tag = 'input window, operand 4, single buffered']
    #allocation11 [shape = 'u8[4096]{0}', space=vmem, size = 0x1000, scoped, tag = 'input window, operand 5, single buffered']
    #allocation12 [shape = 's32[1]{0}', space=sflag, size = 0x4, scoped, tag = 'scoped memory for tpu_custom_call.1']
    #allocation13 [shape = 'u8[8192]{0}', space=vmem, size = 0x2000, scoped, tag = 'output window, operand 0, single buffered']
    %11 = vsyncpa [#allocation3], 0
    %12 = vsyncpa [#allocation6], 0
    %13 = vsyncpa [#allocation9], 0
    %14 = vsyncpa [#allocation12], 0
    %15 = vsyncpa [#allocation4], 0
    // Predicated region
    $region2: #{tpu_custom_call.1} parent=1 // pred_check
      _
    $region3: #{tpu_custom_call.1} parent=1 // pred_check_branch
      %17 = sbr.rel (0) target = $region5
    $region4: #{tpu_custom_call.1} parent=1 // pred_region
      %19 = vsyncadd [#allocation3], 0
      %s20 = sshll.u32 %s0, 4
      %s21 = int_to_ptr.hbm [resolvable:$true] %s20
      %s22 = sshll.u32 [#allocation2], 4
      %s23 = int_to_ptr.vmem [resolvable:$true] %s22
      %28 = dma.hbm_to_vmem [thread:$0]  %s21, 256, %s23, [#allocation3], 128, 128, 8
    $region5: #{tpu_custom_call.1} parent=1 // pred_fallthru
      _
    // Predicated region
    $region6: #{tpu_custom_call.1} parent=1 // pred_check
      _
    $region7: #{tpu_custom_call.1} parent=1 // pred_check_branch
      %30 = sbr.rel (0) target = $region9
    $region8: #{tpu_custom_call.1} parent=1 // pred_region
      %32 = vsyncadd [#allocation6], 0
      %s33 = sshll.u32 %s1, 4
      %s34 = int_to_ptr.hbm [resolvable:$true] %s33
      %s35 = sshll.u32 [#allocation5], 4
      %s36 = int_to_ptr.vmem [resolvable:$true] %s35
      %41 = dma.hbm_to_vmem [thread:$0]  %s34, 256, %s36, [#allocation6], 128, 128, 8
    $region9: #{tpu_custom_call.1} parent=1 // pred_fallthru
      _
    // Predicated region
    $region10: #{tpu_custom_call.1} parent=1 // pred_check
      _
    $region11: #{tpu_custom_call.1} parent=1 // pred_check_branch
      %43 = sbr.rel (0) target = $region13
    $region12: #{tpu_custom_call.1} parent=1 // pred_region
      %45 = vsyncadd [#allocation6], 0
      %s46 = sshll.u32 %s2, 4
      %s47 = int_to_ptr.hbm [resolvable:$true] %s46
      %s48 = sshll.u32 [#allocation7], 4
      %s49 = int_to_ptr.vmem [resolvable:$true] %s48
      %54 = dma.hbm_to_vmem [thread:$0]  %s47, 256, %s49, [#allocation6], 128, 128, 8
    $region13: #{tpu_custom_call.1} parent=1 // pred_fallthru
      _
    // Predicated region
    $region14: #{tpu_custom_call.1} parent=1 // pred_check
      _
    $region15: #{tpu_custom_call.1} parent=1 // pred_check_branch
      %56 = sbr.rel (0) target = $region17
    $region16: #{tpu_custom_call.1} parent=1 // pred_region
      %58 = vsyncadd [#allocation9], 0
      %s59 = sshll.u32 %s3, 4
      %s60 = int_to_ptr.hbm [resolvable:$true] %s59
      %s61 = sshll.u32 [#allocation8], 4
      %s62 = int_to_ptr.vmem [resolvable:$true] %s61
      %67 = dma.hbm_to_vmem [thread:$0]  %s60, 768, %s62, [#allocation9], 64, 64, 4
    $region17: #{tpu_custom_call.1} parent=1 // pred_fallthru
      _
    // Predicated region
    $region18: #{tpu_custom_call.1} parent=1 // pred_check
      _
    $region19: #{tpu_custom_call.1} parent=1 // pred_check_branch
      %69 = sbr.rel (0) target = $region21
    $region20: #{tpu_custom_call.1} parent=1 // pred_region
      %71 = vsyncadd [#allocation9], 0
      %s72 = sshll.u32 %s4, 4
      %s73 = int_to_ptr.hbm [resolvable:$true] %s72
      %s74 = sshll.u32 [#allocation10], 4
      %s75 = int_to_ptr.vmem [resolvable:$true] %s74
      %80 = dma.hbm_to_vmem [thread:$0]  %s73, 256, %s75, [#allocation9], 64, 64, 4
    $region21: #{tpu_custom_call.1} parent=1 // pred_fallthru
      _
    // Predicated region
    $region22: #{tpu_custom_call.1} parent=1 // pred_check
      _
    $region23: #{tpu_custom_call.1} parent=1 // pred_check_branch
      %82 = sbr.rel (0) target = $region25
    $region24: #{tpu_custom_call.1} parent=1 // pred_region
      %84 = vsyncadd [#allocation12], 0
      %s86 = sshll.u32 %s5, 4
      %s87 = int_to_ptr.hbm [resolvable:$true] %s86
      %s88 = sshll.u32 [#allocation11], 4
      %s89 = int_to_ptr.vmem [resolvable:$true] %s88
      %91 = dma.hbm_to_vmem [thread:$0]  %s87, 128, %s89, [#allocation12]
    $region25: #{tpu_custom_call.1} parent=1 // pred_fallthru
      _
    // Predicated region
    $region26: #{tpu_custom_call.1} parent=1 // pred_check
      _
    $region27: #{tpu_custom_call.1} parent=1 // pred_check_branch
      %93 = sbr.rel (0) target = $region29
    $region28: #{tpu_custom_call.1} parent=1 // pred_region
      %95 = dma.done [#allocation3], 256
    $region29: #{tpu_custom_call.1} parent=1 // pred_fallthru
      _
    // Predicated region
    $region30: #{tpu_custom_call.1} parent=1 // pred_check
      _
    $region31: #{tpu_custom_call.1} parent=1 // pred_check_branch
      %97 = sbr.rel (0) target = $region33
    $region32: #{tpu_custom_call.1} parent=1 // pred_region
      %99 = dma.done [#allocation6], 256
    $region33: #{tpu_custom_call.1} parent=1 // pred_fallthru
      _
    // Predicated region
    $region34: #{tpu_custom_call.1} parent=1 // pred_check
      _
    $region35: #{tpu_custom_call.1} parent=1 // pred_check_branch
      %101 = sbr.rel (0) target = $region37
    $region36: #{tpu_custom_call.1} parent=1 // pred_region
      %103 = dma.done [#allocation6], 256
    $region37: #{tpu_custom_call.1} parent=1 // pred_fallthru
      _
    // Predicated region
    $region38: #{tpu_custom_call.1} parent=1 // pred_check
      _
    $region39: #{tpu_custom_call.1} parent=1 // pred_check_branch
      %105 = sbr.rel (0) target = $region41
    $region40: #{tpu_custom_call.1} parent=1 // pred_region
      %107 = dma.done [#allocation9], 768
    $region41: #{tpu_custom_call.1} parent=1 // pred_fallthru
      _
    // Predicated region
    $region42: #{tpu_custom_call.1} parent=1 // pred_check
      _
    $region43: #{tpu_custom_call.1} parent=1 // pred_check_branch
      %109 = sbr.rel (0) target = $region45
    $region44: #{tpu_custom_call.1} parent=1 // pred_region
      %111 = dma.done [#allocation9], 256
    $region45: #{tpu_custom_call.1} parent=1 // pred_fallthru
      _
    // Predicated region
    $region46: #{tpu_custom_call.1} parent=1 // pred_check
      _
    $region47: #{tpu_custom_call.1} parent=1 // pred_check_branch
      %113 = sbr.rel (0) target = $region49
    $region48: #{tpu_custom_call.1} parent=1 // pred_region
      %115 = dma.done [#allocation12], 128
    $region49: #{tpu_custom_call.1} parent=1 // pred_fallthru
      _
    %v117 = vld [vmem:[#allocation2] sm:$0xff]
    %v118 = vld [vmem:[#allocation2 + $0x8] sm:$0xff]
    %v119 = vld [vmem:[#allocation5] sm:$0xff]
    %v120 = vld [vmem:[#allocation5 + $0x8] sm:$0xff]
    %v121 = vld [vmem:[#allocation7] sm:$0xff]
    %v122 = vld [vmem:[#allocation7 + $0x8] sm:$0xff]
    %v123 = vld [vmem:[#allocation11] sm:$0xff]
    %v124 = vpack.c.bf16 %v118, %v117
    %v125 = vld [vmem:[#allocation8] sm:$0xf]
    %v126 = vld [vmem:[#allocation8 + $0x4] sm:$0xf]
    %v127 = vld [vmem:[#allocation8 + $0x8] sm:$0xf]
    %v128 = vld [vmem:[#allocation8 + $0xc] sm:$0xf]
    %v129 = vperm.slane %v123, 0
    %v134 = vunpack.c.l.b16 %v125
    %v135 = vunpack.c.l.b16 %v126
    %v136 = vunpack.c.l.b16 %v127
    %v137 = vunpack.c.l.b16 %v128
    %v138 = vpack.c.b16 %v135, %v134
    %v139 = vpack.c.b16 %v137, %v136
    %vm142 = vcmask 261120
    %v144 = vsel %vm142, %v124, 0
    %146 = vmatpush.bf16.msra.mxu0 0
    %147 = vmatpush.bf16.msra.mxu0 0
    %148 = vmatpush.bf16.msra.mxu0 0
    %149 = vmatpush.bf16.msra.mxu0 0
    %150 = vmatpush.bf16.msra.mxu0 0
    %151 = vmatpush.bf16.msra.mxu0 0
    %152 = vmatpush.bf16.msra.mxu0 %v139
    %153 = vmatpush.bf16.msra.mxu0 %v138
    %154 = vmatmul.bf16.gmra.mxu0 %v144
    %v155 = vpop.f32.mrf.mxu0
    %v156 = vadd.f32 %v129, %v155
    %v157 = vpop.f32.mrf.mxu0
    %v158 = vadd.f32 %v129, %v157
    %159 = vdwg.mxu0
    %v160 = vpack.c.bf16 %v120, %v119
    %s161 = scalar_lea.vmem [#allocation8], 16
    %v162 = vld [vmem:[%s161] sm:$0xf]
    %v163 = vld [vmem:[%s161 + $0x4] sm:$0xf]
    %v164 = vld [vmem:[%s161 + $0x8] sm:$0xf]
    %v165 = vld [vmem:[%s161 + $0xc] sm:$0xf]
    %v166 = vperm.slane %v123, 1
    %v171 = vunpack.c.l.b16 %v162
    %v172 = vunpack.c.l.b16 %v163
    %v173 = vunpack.c.l.b16 %v164
    %v174 = vunpack.c.l.b16 %v165
    %v175 = vpack.c.b16 %v172, %v171
    %v176 = vpack.c.b16 %v174, %v173
    %v180 = vsel %vm142, %v160, 0
    %182 = vmatpush.bf16.msra.mxu0 0
    %183 = vmatpush.bf16.msra.mxu0 0
    %184 = vmatpush.bf16.msra.mxu0 0
    %185 = vmatpush.bf16.msra.mxu0 0
    %186 = vmatpush.bf16.msra.mxu0 0
    %187 = vmatpush.bf16.msra.mxu0 0
    %188 = vmatpush.bf16.msra.mxu0 %v176
    %189 = vmatpush.bf16.msra.mxu0 %v175
    %190 = vmatmul.bf16.gmra.mxu0 %v180
    %v191 = vpop.f32.mrf.mxu0
    %v192 = vadd.f32 %v166, %v191
    %v193 = vpop.f32.mrf.mxu0
    %v194 = vadd.f32 %v166, %v193
    %195 = vdwg.mxu0
    %v196 = vpack.c.bf16 %v122, %v121
    %s197 = scalar_lea.vmem [#allocation8], 32
    %v198 = vld [vmem:[%s197] sm:$0xf]
    %v199 = vld [vmem:[%s197 + $0x4] sm:$0xf]
    %v200 = vld [vmem:[%s197 + $0x8] sm:$0xf]
    %v201 = vld [vmem:[%s197 + $0xc] sm:$0xf]
    %v202 = vperm.slane %v123, 2
    %v207 = vunpack.c.l.b16 %v198
    %v208 = vunpack.c.l.b16 %v199
    %v209 = vunpack.c.l.b16 %v200
    %v210 = vunpack.c.l.b16 %v201
    %v211 = vpack.c.b16 %v208, %v207
    %v212 = vpack.c.b16 %v210, %v209
    %v216 = vsel %vm142, %v196, 0
    %218 = vmatpush.bf16.msra.mxu0 0
    %219 = vmatpush.bf16.msra.mxu0 0
    %220 = vmatpush.bf16.msra.mxu0 0
    %221 = vmatpush.bf16.msra.mxu0 0
    %222 = vmatpush.bf16.msra.mxu0 0
    %223 = vmatpush.bf16.msra.mxu0 0
    %224 = vmatpush.bf16.msra.mxu0 %v212
    %225 = vmatpush.bf16.msra.mxu0 %v211
    %226 = vmatmul.bf16.gmra.mxu0 %v216
    %v227 = vpop.f32.mrf.mxu0
    %v228 = vadd.f32 %v202, %v227
    %v229 = vpop.f32.mrf.mxu0
    %v230 = vadd.f32 %v202, %v229
    %231 = vdwg.mxu0
    %v232 = vpack.c.bf16 %v156, %v156
    %v233 = vpack.c.bf16 %v158, %v158
    %v234 = vpack.c.bf16 %v192, %v192
    %v235 = vpack.c.bf16 %v194, %v194
    %v236 = vpack.c.bf16 %v228, %v228
    %v237 = vpack.c.bf16 %v230, %v230
    %vm238 = vcmask 64512
    %v240 = vsel %vm238, %v232, 0
    %v243 = vsel %vm238, %v234, 0
    %245 = vmatpush.bf16.xpose.msra.mxu0 0
    %246 = vmatpush.bf16.xpose.msra.mxu0 0
    %247 = vmatpush.bf16.xpose.msra.mxu0 0
    %248 = vmatpush.bf16.xpose.msra.mxu0 0
    %249 = vmatpush.bf16.xpose.msra.mxu0 0
    %250 = vmatpush.bf16.xpose.msra.mxu0 0
    %251 = vmatpush.bf16.xpose.msra.mxu0 0
    %252 = vmatpush.bf16.xpose.msra.mxu0 %v243
    %253 = vmatmul.bf16.gmra.mxu0 %v240
    %v254 = vpop.f32.mrf.mxu0
    %v255 = vadd.f32 0.0, %v254
    %v256 = vpop.f32.mrf.mxu0
    %257 = vdwg.mxu0
    %v258 = vsel %vm238, %v255, -inf
    %259 = vmax.xlane.f32.xlu0 %v258
    %v260 = vpop.xlane.xlu0 %259
    %v261 = vsub.f32 %v255, %v260
    %v262 = vmul.f32 %v261, 1.442695
    %v263 = vpow.pop %v262
    %v264 = vsel %vm238, %v263, 0.0
    %265 = vadd.xlane.f32.xlu0 %v264
    %v266 = vpop.xlane.xlu0 %265
    %v267 = vrcp.pop %v266
    %v268 = vmul.f32 %v263, %v267
    %v269 = vpack.c.bf16 %v268, %v268
    %v271 = vsel %vm238, %v269, 0
    %vm273 = vcmask 1043456
    %v275 = vsel %vm273, %v236, 0
    %277 = vmatpush.bf16.msra.mxu0 0
    %278 = vmatpush.bf16.msra.mxu0 0
    %279 = vmatpush.bf16.msra.mxu0 0
    %280 = vmatpush.bf16.msra.mxu0 0
    %281 = vmatpush.bf16.msra.mxu0 0
    %282 = vmatpush.bf16.msra.mxu0 0
    %283 = vmatpush.bf16.msra.mxu0 0
    %284 = vmatpush.bf16.msra.mxu0 %v275
    %285 = vmatmul.bf16.gmra.mxu0 %v271
    %v286 = vpop.f32.mrf.mxu0
    %v287 = vadd.f32 0.0, %v286
    %v288 = vpop.f32.mrf.mxu0
    %289 = vdwg.mxu0
    %v291 = vunpack.c.l.b16 %v232
    %v292 = vpack.c.b16 %v291, %v291
    %293 = vrot.lane.b32.xlu0 %v292, 120
    %v294 = vpop.permute.xlu0 %293
    %v296 = vunpack.c.l.b16 %v234
    %v297 = vpack.c.b16 %v296, %v296
    %298 = vrot.lane.b32.xlu0 %v297, 120
    %v299 = vpop.permute.xlu0 %298
    %v301 = vsel %vm238, %v294, 0
    %v304 = vsel %vm238, %v299, 0
    %306 = vmatpush.bf16.xpose.msra.mxu0 0
    %307 = vmatpush.bf16.xpose.msra.mxu0 0
    %308 = vmatpush.bf16.xpose.msra.mxu0 0
    %309 = vmatpush.bf16.xpose.msra.mxu0 0
    %310 = vmatpush.bf16.xpose.msra.mxu0 0
    %311 = vmatpush.bf16.xpose.msra.mxu0 0
    %312 = vmatpush.bf16.xpose.msra.mxu0 0
    %313 = vmatpush.bf16.xpose.msra.mxu0 %v304
    %314 = vmatmul.bf16.gmra.mxu0 %v301
    %v315 = vpop.f32.mrf.mxu0
    %v316 = vadd.f32 0.0, %v315
    %v317 = vpop.f32.mrf.mxu0
    %318 = vdwg.mxu0
    %v319 = vsel %vm238, %v316, -inf
    %320 = vmax.xlane.f32.xlu0 %v319
    %v321 = vpop.xlane.xlu0 %320
    %v322 = vsub.f32 %v316, %v321
    %v323 = vmul.f32 %v322, 1.442695
    %v324 = vpow.pop %v323
    %v325 = vsel %vm238, %v324, 0.0
    %326 = vadd.xlane.f32.xlu0 %v325
    %v327 = vpop.xlane.xlu0 %326
    %v328 = vrcp.pop %v327
    %v329 = vmul.f32 %v324, %v328
    %v330 = vpack.c.bf16 %v329, %v329
    %v332 = vunpack.c.l.b16 %v236
    %v333 = vpack.c.b16 %v332, %v332
    %334 = vrot.lane.b32.xlu0 %v333, 120
    %v335 = vpop.permute.xlu0 %334
    %v337 = vsel %vm238, %v330, 0
    %v340 = vsel %vm273, %v335, 0
    %342 = vmatpush.bf16.msra.mxu0 0
    %343 = vmatpush.bf16.msra.mxu0 0
    %344 = vmatpush.bf16.msra.mxu0 0
    %345 = vmatpush.bf16.msra.mxu0 0
    %346 = vmatpush.bf16.msra.mxu0 0
    %347 = vmatpush.bf16.msra.mxu0 0
    %348 = vmatpush.bf16.msra.mxu0 0
    %349 = vmatpush.bf16.msra.mxu0 %v340
    %350 = vmatmul.bf16.gmra.mxu0 %v337
    %v351 = vpop.f32.mrf.mxu0
    %v352 = vadd.f32 0.0, %v351
    %v353 = vpop.f32.mrf.mxu0
    %354 = vdwg.mxu0
    %355 = vrot.lane.b32.xlu0 %v292, 112
    %v356 = vpop.permute.xlu0 %355
    %357 = vrot.lane.b32.xlu0 %v297, 112
    %v358 = vpop.permute.xlu0 %357
    %v360 = vsel %vm238, %v356, 0
    %v363 = vsel %vm238, %v358, 0
    %365 = vmatpush.bf16.xpose.msra.mxu0 0
    %366 = vmatpush.bf16.xpose.msra.mxu0 0
    %367 = vmatpush.bf16.xpose.msra.mxu0 0
    %368 = vmatpush.bf16.xpose.msra.mxu0 0
    %369 = vmatpush.bf16.xpose.msra.mxu0 0
    %370 = vmatpush.bf16.xpose.msra.mxu0 0
    %371 = vmatpush.bf16.xpose.msra.mxu0 0
    %372 = vmatpush.bf16.xpose.msra.mxu0 %v363
    %373 = vmatmul.bf16.gmra.mxu0 %v360
    %v374 = vpop.f32.mrf.mxu0
    %v375 = vadd.f32 0.0, %v374
    %v376 = vpop.f32.mrf.mxu0
    %377 = vdwg.mxu0
    %v378 = vsel %vm238, %v375, -inf
    %379 = vmax.xlane.f32.xlu0 %v378
    %v380 = vpop.xlane.xlu0 %379
    %v381 = vsub.f32 %v375, %v380
    %v382 = vmul.f32 %v381, 1.442695
    %v383 = vpow.pop %v382
    %v384 = vsel %vm238, %v383, 0.0
    %385 = vadd.xlane.f32.xlu0 %v384
    %v386 = vpop.xlane.xlu0 %385
    %v387 = vrcp.pop %v386
    %v388 = vmul.f32 %v383, %v387
    %v389 = vpack.c.bf16 %v388, %v388
    %390 = vrot.lane.b32.xlu0 %v333, 112
    %v391 = vpop.permute.xlu0 %390
    %v393 = vsel %vm238, %v389, 0
    %v396 = vsel %vm273, %v391, 0
    %398 = vmatpush.bf16.msra.mxu0 0
    %399 = vmatpush.bf16.msra.mxu0 0
    %400 = vmatpush.bf16.msra.mxu0 0
    %401 = vmatpush.bf16.msra.mxu0 0
    %402 = vmatpush.bf16.msra.mxu0 0
    %403 = vmatpush.bf16.msra.mxu0 0
    %404 = vmatpush.bf16.msra.mxu0 0
    %405 = vmatpush.bf16.msra.mxu0 %v396
    %406 = vmatmul.bf16.gmra.mxu0 %v393
    %v407 = vpop.f32.mrf.mxu0
    %v408 = vadd.f32 0.0, %v407
    %v409 = vpop.f32.mrf.mxu0
    %410 = vdwg.mxu0
    %411 = vrot.lane.b32.xlu0 %v292, 104
    %v412 = vpop.permute.xlu0 %411
    %413 = vrot.lane.b32.xlu0 %v297, 104
    %v414 = vpop.permute.xlu0 %413
    %v416 = vsel %vm238, %v412, 0
    %v419 = vsel %vm238, %v414, 0
    %421 = vmatpush.bf16.xpose.msra.mxu0 0
    %422 = vmatpush.bf16.xpose.msra.mxu0 0
    %423 = vmatpush.bf16.xpose.msra.mxu0 0
    %424 = vmatpush.bf16.xpose.msra.mxu0 0
    %425 = vmatpush.bf16.xpose.msra.mxu0 0
    %426 = vmatpush.bf16.xpose.msra.mxu0 0
    %427 = vmatpush.bf16.xpose.msra.mxu0 0
    %428 = vmatpush.bf16.xpose.msra.mxu0 %v419
    %429 = vmatmul.bf16.gmra.mxu0 %v416
    %v430 = vpop.f32.mrf.mxu0
    %v431 = vadd.f32 0.0, %v430
    %v432 = vpop.f32.mrf.mxu0
    %433 = vdwg.mxu0
    %v434 = vsel %vm238, %v431, -inf
    %435 = vmax.xlane.f32.xlu0 %v434
    %v436 = vpop.xlane.xlu0 %435
    %v437 = vsub.f32 %v431, %v436
    %v438 = vmul.f32 %v437, 1.442695
    %v439 = vpow.pop %v438
    %v440 = vsel %vm238, %v439, 0.0
    %441 = vadd.xlane.f32.xlu0 %v440
    %v442 = vpop.xlane.xlu0 %441
    %v443 = vrcp.pop %v442
    %v444 = vmul.f32 %v439, %v443
    %v445 = vpack.c.bf16 %v444, %v444
    %446 = vrot.lane.b32.xlu0 %v333, 104
    %v447 = vpop.permute.xlu0 %446
    %v449 = vsel %vm238, %v445, 0
    %v452 = vsel %vm273, %v447, 0
    %454 = vmatpush.bf16.msra.mxu0 0
    %455 = vmatpush.bf16.msra.mxu0 0
    %456 = vmatpush.bf16.msra.mxu0 0
    %457 = vmatpush.bf16.msra.mxu0 0
    %458 = vmatpush.bf16.msra.mxu0 0
    %459 = vmatpush.bf16.msra.mxu0 0
    %460 = vmatpush.bf16.msra.mxu0 0
    %461 = vmatpush.bf16.msra.mxu0 %v452
    %462 = vmatmul.bf16.gmra.mxu0 %v449
    %v463 = vpop.f32.mrf.mxu0
    %v464 = vadd.f32 0.0, %v463
    %v465 = vpop.f32.mrf.mxu0
    %466 = vdwg.mxu0
    %468 = vrot.lane.b32.xlu0 %v352, 8
    %v469 = vpop.permute.xlu0 %468
    %472 = vrot.lane.b32.xlu0 %v408, 16
    %v473 = vpop.permute.xlu0 %472
    %476 = vrot.lane.b32.xlu0 %v464, 24
    %v477 = vpop.permute.xlu0 %476
    %v479 = vsel %vm238, %v287, %v469
    %vm480 = vcmask 130048
    %v481 = vsel %vm480, %v479, %v473
    %vm482 = vcmask 195584
    %v483 = vsel %vm482, %v481, %v477
    %v485 = vsel %vm238, %v233, 0
    %v488 = vsel %vm238, %v235, 0
    %490 = vmatpush.bf16.xpose.msra.mxu0 0
    %491 = vmatpush.bf16.xpose.msra.mxu0 0
    %492 = vmatpush.bf16.xpose.msra.mxu0 0
    %493 = vmatpush.bf16.xpose.msra.mxu0 0
    %494 = vmatpush.bf16.xpose.msra.mxu0 0
    %495 = vmatpush.bf16.xpose.msra.mxu0 0
    %496 = vmatpush.bf16.xpose.msra.mxu0 0
    %497 = vmatpush.bf16.xpose.msra.mxu0 %v488
    %498 = vmatmul.bf16.gmra.mxu0 %v485
    %v499 = vpop.f32.mrf.mxu0
    %v500 = vadd.f32 0.0, %v499
    %v501 = vpop.f32.mrf.mxu0
    %502 = vdwg.mxu0
    %v503 = vsel %vm238, %v500, -inf
    %504 = vmax.xlane.f32.xlu0 %v503
    %v505 = vpop.xlane.xlu0 %504
    %v506 = vsub.f32 %v500, %v505
    %v507 = vmul.f32 %v506, 1.442695
    %v508 = vpow.pop %v507
    %v509 = vsel %vm238, %v508, 0.0
    %510 = vadd.xlane.f32.xlu0 %v509
    %v511 = vpop.xlane.xlu0 %510
    %v512 = vrcp.pop %v511
    %v513 = vmul.f32 %v508, %v512
    %v514 = vpack.c.bf16 %v513, %v513
    %v516 = vsel %vm238, %v514, 0
    %v519 = vsel %vm273, %v237, 0
    %521 = vmatpush.bf16.msra.mxu0 0
    %522 = vmatpush.bf16.msra.mxu0 0
    %523 = vmatpush.bf16.msra.mxu0 0
    %524 = vmatpush.bf16.msra.mxu0 0
    %525 = vmatpush.bf16.msra.mxu0 0
    %526 = vmatpush.bf16.msra.mxu0 0
    %527 = vmatpush.bf16.msra.mxu0 0
    %528 = vmatpush.bf16.msra.mxu0 %v519
    %529 = vmatmul.bf16.gmra.mxu0 %v516
    %v530 = vpop.f32.mrf.mxu0
    %v531 = vadd.f32 0.0, %v530
    %v532 = vpop.f32.mrf.mxu0
    %533 = vdwg.mxu0
    %v535 = vunpack.c.l.b16 %v233
    %v536 = vpack.c.b16 %v535, %v535
    %537 = vrot.lane.b32.xlu0 %v536, 120
    %v538 = vpop.permute.xlu0 %537
    %v540 = vunpack.c.l.b16 %v235
    %v541 = vpack.c.b16 %v540, %v540
    %542 = vrot.lane.b32.xlu0 %v541, 120
    %v543 = vpop.permute.xlu0 %542
    %v545 = vsel %vm238, %v538, 0
    %v548 = vsel %vm238, %v543, 0
    %550 = vmatpush.bf16.xpose.msra.mxu0 0
    %551 = vmatpush.bf16.xpose.msra.mxu0 0
    %552 = vmatpush.bf16.xpose.msra.mxu0 0
    %553 = vmatpush.bf16.xpose.msra.mxu0 0
    %554 = vmatpush.bf16.xpose.msra.mxu0 0
    %555 = vmatpush.bf16.xpose.msra.mxu0 0
    %556 = vmatpush.bf16.xpose.msra.mxu0 0
    %557 = vmatpush.bf16.xpose.msra.mxu0 %v548
    %558 = vmatmul.bf16.gmra.mxu0 %v545
    %v559 = vpop.f32.mrf.mxu0
    %v560 = vadd.f32 0.0, %v559
    %v561 = vpop.f32.mrf.mxu0
    %562 = vdwg.mxu0
    %v563 = vsel %vm238, %v560, -inf
    %564 = vmax.xlane.f32.xlu0 %v563
    %v565 = vpop.xlane.xlu0 %564
    %v566 = vsub.f32 %v560, %v565
    %v567 = vmul.f32 %v566, 1.442695
    %v568 = vpow.pop %v567
    %v569 = vsel %vm238, %v568, 0.0
    %570 = vadd.xlane.f32.xlu0 %v569
    %v571 = vpop.xlane.xlu0 %570
    %v572 = vrcp.pop %v571
    %v573 = vmul.f32 %v568, %v572
    %v574 = vpack.c.bf16 %v573, %v573
    %v576 = vunpack.c.l.b16 %v237
    %v577 = vpack.c.b16 %v576, %v576
    %578 = vrot.lane.b32.xlu0 %v577, 120
    %v579 = vpop.permute.xlu0 %578
    %v581 = vsel %vm238, %v574, 0
    %v584 = vsel %vm273, %v579, 0
    %586 = vmatpush.bf16.msra.mxu0 0
    %587 = vmatpush.bf16.msra.mxu0 0
    %588 = vmatpush.bf16.msra.mxu0 0
    %589 = vmatpush.bf16.msra.mxu0 0
    %590 = vmatpush.bf16.msra.mxu0 0
    %591 = vmatpush.bf16.msra.mxu0 0
    %592 = vmatpush.bf16.msra.mxu0 0
    %593 = vmatpush.bf16.msra.mxu0 %v584
    %594 = vmatmul.bf16.gmra.mxu0 %v581
    %v595 = vpop.f32.mrf.mxu0
    %v596 = vadd.f32 0.0, %v595
    %v597 = vpop.f32.mrf.mxu0
    %598 = vdwg.mxu0
    %599 = vrot.lane.b32.xlu0 %v536, 112
    %v600 = vpop.permute.xlu0 %599
    %601 = vrot.lane.b32.xlu0 %v541, 112
    %v602 = vpop.permute.xlu0 %601
    %v604 = vsel %vm238, %v600, 0
    %v607 = vsel %vm238, %v602, 0
    %609 = vmatpush.bf16.xpose.msra.mxu0 0
    %610 = vmatpush.bf16.xpose.msra.mxu0 0
    %611 = vmatpush.bf16.xpose.msra.mxu0 0
    %612 = vmatpush.bf16.xpose.msra.mxu0 0
    %613 = vmatpush.bf16.xpose.msra.mxu0 0
    %614 = vmatpush.bf16.xpose.msra.mxu0 0
    %615 = vmatpush.bf16.xpose.msra.mxu0 0
    %616 = vmatpush.bf16.xpose.msra.mxu0 %v607
    %617 = vmatmul.bf16.gmra.mxu0 %v604
    %v618 = vpop.f32.mrf.mxu0
    %v619 = vadd.f32 0.0, %v618
    %v620 = vpop.f32.mrf.mxu0
    %621 = vdwg.mxu0
    %v622 = vsel %vm238, %v619, -inf
    %623 = vmax.xlane.f32.xlu0 %v622
    %v624 = vpop.xlane.xlu0 %623
    %v625 = vsub.f32 %v619, %v624
    %v626 = vmul.f32 %v625, 1.442695
    %v627 = vpow.pop %v626
    %v628 = vsel %vm238, %v627, 0.0
    %629 = vadd.xlane.f32.xlu0 %v628
    %v630 = vpop.xlane.xlu0 %629
    %v631 = vrcp.pop %v630
    %v632 = vmul.f32 %v627, %v631
    %v633 = vpack.c.bf16 %v632, %v632
    %634 = vrot.lane.b32.xlu0 %v577, 112
    %v635 = vpop.permute.xlu0 %634
    %v637 = vsel %vm238, %v633, 0
    %v640 = vsel %vm273, %v635, 0
    %642 = vmatpush.bf16.msra.mxu0 0
    %643 = vmatpush.bf16.msra.mxu0 0
    %644 = vmatpush.bf16.msra.mxu0 0
    %645 = vmatpush.bf16.msra.mxu0 0
    %646 = vmatpush.bf16.msra.mxu0 0
    %647 = vmatpush.bf16.msra.mxu0 0
    %648 = vmatpush.bf16.msra.mxu0 0
    %649 = vmatpush.bf16.msra.mxu0 %v640
    %650 = vmatmul.bf16.gmra.mxu0 %v637
    %v651 = vpop.f32.mrf.mxu0
    %v652 = vadd.f32 0.0, %v651
    %v653 = vpop.f32.mrf.mxu0
    %654 = vdwg.mxu0
    %655 = vrot.lane.b32.xlu0 %v536, 104
    %v656 = vpop.permute.xlu0 %655
    %657 = vrot.lane.b32.xlu0 %v541, 104
    %v658 = vpop.permute.xlu0 %657
    %v660 = vsel %vm238, %v656, 0
    %v663 = vsel %vm238, %v658, 0
    %665 = vmatpush.bf16.xpose.msra.mxu0 0
    %666 = vmatpush.bf16.xpose.msra.mxu0 0
    %667 = vmatpush.bf16.xpose.msra.mxu0 0
    %668 = vmatpush.bf16.xpose.msra.mxu0 0
    %669 = vmatpush.bf16.xpose.msra.mxu0 0
    %670 = vmatpush.bf16.xpose.msra.mxu0 0
    %671 = vmatpush.bf16.xpose.msra.mxu0 0
    %672 = vmatpush.bf16.xpose.msra.mxu0 %v663
    %673 = vmatmul.bf16.gmra.mxu0 %v660
    %v674 = vpop.f32.mrf.mxu0
    %v675 = vadd.f32 0.0, %v674
    %v676 = vpop.f32.mrf.mxu0
    %677 = vdwg.mxu0
    %v678 = vsel %vm238, %v675, -inf
    %679 = vmax.xlane.f32.xlu0 %v678
    %v680 = vpop.xlane.xlu0 %679
    %v681 = vsub.f32 %v675, %v680
    %v682 = vmul.f32 %v681, 1.442695
    %v683 = vpow.pop %v682
    %v684 = vsel %vm238, %v683, 0.0
    %685 = vadd.xlane.f32.xlu0 %v684
    %v686 = vpop.xlane.xlu0 %685
    %v687 = vrcp.pop %v686
    %v688 = vmul.f32 %v683, %v687
    %v689 = vpack.c.bf16 %v688, %v688
    %690 = vrot.lane.b32.xlu0 %v577, 104
    %v691 = vpop.permute.xlu0 %690
    %v693 = vsel %vm238, %v689, 0
    %v696 = vsel %vm273, %v691, 0
    %698 = vmatpush.bf16.msra.mxu0 0
    %699 = vmatpush.bf16.msra.mxu0 0
    %700 = vmatpush.bf16.msra.mxu0 0
    %701 = vmatpush.bf16.msra.mxu0 0
    %702 = vmatpush.bf16.msra.mxu0 0
    %703 = vmatpush.bf16.msra.mxu0 0
    %704 = vmatpush.bf16.msra.mxu0 0
    %705 = vmatpush.bf16.msra.mxu0 %v696
    %706 = vmatmul.bf16.gmra.mxu0 %v693
    %v707 = vpop.f32.mrf.mxu0
    %v708 = vadd.f32 0.0, %v707
    %v709 = vpop.f32.mrf.mxu0
    %710 = vdwg.mxu0
    %712 = vrot.lane.b32.xlu0 %v596, 8
    %v713 = vpop.permute.xlu0 %712
    %716 = vrot.lane.b32.xlu0 %v652, 16
    %v717 = vpop.permute.xlu0 %716
    %720 = vrot.lane.b32.xlu0 %v708, 24
    %v721 = vpop.permute.xlu0 %720
    %v723 = vsel %vm238, %v531, %v713
    %v724 = vsel %vm480, %v723, %v717
    %v725 = vsel %vm482, %v724, %v721
    %v726 = vpack.c.bf16 %v725, %v483
    %v727 = vld [vmem:[#allocation10] sm:$0xf]
    %v728 = vld [vmem:[#allocation10 + $0x4] sm:$0xf]
    %v729 = vld [vmem:[#allocation10 + $0x8] sm:$0xf]
    %v730 = vld [vmem:[#allocation10 + $0xc] sm:$0xf]
    %v731 = vperm.slane %v123, 3
    %v736 = vunpack.c.l.b16 %v727
    %v737 = vunpack.c.l.b16 %v728
    %v738 = vunpack.c.l.b16 %v729
    %v739 = vunpack.c.l.b16 %v730
    %v740 = vpack.c.b16 %v737, %v736
    %v741 = vpack.c.b16 %v739, %v738
    %v745 = vsel %vm142, %v726, 0
    %747 = vmatpush.bf16.msra.mxu0 0
    %748 = vmatpush.bf16.msra.mxu0 0
    %749 = vmatpush.bf16.msra.mxu0 0
    %750 = vmatpush.bf16.msra.mxu0 0
    %751 = vmatpush.bf16.msra.mxu0 0
    %752 = vmatpush.bf16.msra.mxu0 0
    %753 = vmatpush.bf16.msra.mxu0 %v741
    %754 = vmatpush.bf16.msra.mxu0 %v740
    %755 = vmatmul.bf16.gmra.mxu0 %v745
    %v756 = vpop.f32.mrf.mxu0
    %v757 = vadd.f32 %v731, %v756
    %v758 = vpop.f32.mrf.mxu0
    %v759 = vadd.f32 %v731, %v758
    %760 = vdwg.mxu0
    %v761 = vsel %vm142, %v757, 0.0
    %762 = vadd.xlane.f32.xlu0 %v761
    %v763 = vpop.xlane.xlu0 %762
    %v764 = vsel %vm142, %v759, 0.0
    %765 = vadd.xlane.f32.xlu0 %v764
    %v766 = vpop.xlane.xlu0 %765
    %v767 = vrcp.pop 32.0
    %v768 = vmul.f32 32.0, %v767
    %v769 = vsub.f32 1.0, %v768
    %v770 = vmul.f32 %v767, %v769
    %v771 = vadd.f32 %v767, %v770
    %vm772 = vweird.f32 %v767
    %v773 = vsel %vm772, %v767, %v771
    %v774 = vmul.f32 %v763, %v773
    %v775 = vmul.f32 %v766, %v773
    %v776 = vsub.f32 %v757, %v774
    %v777 = vsub.f32 %v759, %v775
    %v778 = vmul.f32 %v776, %v776
    %v779 = vmul.f32 %v777, %v777
    %v780 = vsel %vm142, %v778, 0.0
    %781 = vadd.xlane.f32.xlu0 %v780
    %v782 = vpop.xlane.xlu0 %781
    %v783 = vsel %vm142, %v779, 0.0
    %784 = vadd.xlane.f32.xlu0 %v783
    %v785 = vpop.xlane.xlu0 %784
    %v786 = vmul.f32 %v782, %v773
    %v787 = vmul.f32 %v785, %v773
    %v788 = vadd.f32 %v786, 1e-05
    %v789 = vadd.f32 %v787, 1e-05
    %v790 = vrsqrt.pop %v788
    %v791 = vmul.f32 %v790, %v788
    %v792 = vmul.f32 %v791, %v790
    %v793 = vmul.f32 0.5, %v792
    %v794 = vsub.f32 1.5, %v793
    %v795 = vmul.f32 %v790, %v794
    %vm796 = vweird.f32 %v788
    %vm797 = vweird.f32 %v790
    %vm798 = vmor %vm796, %vm797
    %v799 = vsel %vm798, %v790, %v795
    %v800 = vrsqrt.pop %v789
    %v801 = vmul.f32 %v800, %v789
    %v802 = vmul.f32 %v801, %v800
    %v803 = vmul.f32 0.5, %v802
    %v804 = vsub.f32 1.5, %v803
    %v805 = vmul.f32 %v800, %v804
    %vm806 = vweird.f32 %v789
    %vm807 = vweird.f32 %v800
    %vm808 = vmor %vm806, %vm807
    %v809 = vsel %vm808, %v800, %v805
    %v810 = vmul.f32 %v776, %v799
    %v811 = vmul.f32 %v777, %v809
    %v812 = vperm.slane %v123, 4
    %v813 = vmul.f32 %v810, %v812
    %v814 = vmul.f32 %v811, %v812
    %v815 = vperm.slane %v123, 5
    %v816 = vadd.f32 %v813, %v815
    %v817 = vadd.f32 %v814, %v815
    %v818 = vadd.f32 %v117, %v816
    %v819 = vadd.f32 %v118, %v817
    %820 = vst.msk [vmem:[#allocation13] sm:$0xff] %vm142, %v818
    %821 = vst.msk [vmem:[#allocation13 + $0x8] sm:$0xff] %vm142, %v819
    // Predicated region
    $region50: #{tpu_custom_call.1} parent=1 // pred_check
      _
    $region51: #{tpu_custom_call.1} parent=1 // pred_check_branch
      %823 = sbr.rel (0) target = $region53
    $region52: #{tpu_custom_call.1} parent=1 // pred_region
      %825 = vsyncadd [#allocation4], 0
      %s826 = sshll.u32 [#allocation13], 4
      %s827 = int_to_ptr.vmem [resolvable:$true] %s826
      %s828 = sshll.u32 %s6, 4
      %s829 = int_to_ptr.hbm [resolvable:$true] %s828
      %834 = dma.vmem_to_hbm [thread:$0]  %s827, 256, %s829, [#allocation4], 128, 128, 8
    $region53: #{tpu_custom_call.1} parent=1 // pred_fallthru
      _
    // Predicated region
    $region54: #{tpu_custom_call.1} parent=1 // pred_check
      _
    $region55: #{tpu_custom_call.1} parent=1 // pred_check_branch
      %836 = sbr.rel (0) target = $region57
    $region56: #{tpu_custom_call.1} parent=1 // pred_region
      %838 = dma.done [#allocation4], 256
    $region57: #{tpu_custom_call.1} parent=1 // pred_fallthru
      _
    %839 = vsyncpa [#allocation3], 1
    %840 = vsyncpa [#allocation6], 1
    %841 = vsyncpa [#allocation9], 1
    %842 = vsyncpa [#allocation12], 1
    %843 = vsyncpa [#allocation4], 1

</llo_original>
